<compile_context>
chip_gen: v7x
topology: tpu7x:2x2x1
jax: 0.10.0
libtpu: 0.0.40
codegen_flags: <defaults>
</compile_context>

<pallas_src>
import functools

import jax
import jax.numpy as jnp
from jax import lax
from jax.experimental import pallas as pl
from jax.experimental.pallas import tpu as pltpu

NEG_SLOPE = 0.2           # negative_slope default of the module
_MSG_DTYPE = jnp.bfloat16  # switch to jnp.float32 for exact-scatter numerics


def _leaky(x):
    # leaky relu (0 < slope < 1) as a single VALU max instead of cmp+select
    return jnp.maximum(x, NEG_SLOPE * x)


def _round_up(x, m):
    return ((x + m - 1) // m) * m


# ----------------------------------------------------------------------------
# Pallas kernels
# ----------------------------------------------------------------------------
def _project_kernel(x_ref, w_ref, pos_ref, o_ref, *, pos_idx):
    # W is pre-padded with zero columns at [pos_idx:]; the fractional-weight
    # (pos) column is merged with a select -> one lane-dense full store.
    proj = jnp.dot(x_ref[...], w_ref[...], preferred_element_type=jnp.float32)
    col = lax.broadcasted_iota(jnp.int32, proj.shape, 1)
    o_ref[...] = jnp.where(col == pos_idx, pos_ref[...], proj)


def _gat_layer_kernel(h_ref, dstc_ref, dstr_ref, srcc_ref, logw_ref,
                      w1a_ref, w1b_ref, w2_ref, pow_ref, o_ref):
    head = pl.program_id(0)

    h = h_ref[...]                                     # [N, Dp] f32
    hb = h.astype(jnp.bfloat16)
    N, Dp = h.shape
    E = dstc_ref.shape[0]

    # In-kernel one-hots from int32 indices (iota + compare, no HBM traffic).
    col_n = lax.broadcasted_iota(jnp.int32, (E, N), 1)
    dst_oh = jnp.where(col_n == dstc_ref[...], 1.0, 0.0).astype(jnp.bfloat16)
    src_oh = jnp.where(col_n == srcc_ref[...], 1.0, 0.0).astype(jnp.bfloat16)
    row_n = lax.broadcasted_iota(jnp.int32, (N, E), 0)
    dst_oh_t = jnp.where(row_n == dstr_ref[...], 1.0, 0.0).astype(_MSG_DTYPE)

    # Fused gate||message first layer applied at node level, then the per-edge
    # [h[dst] || h[src]] @ W1 realized via one-hot MXU gathers.
    pa = jnp.dot(hb, w1a_ref[...], preferred_element_type=jnp.float32)   # [N, FGp]
    pb = jnp.dot(hb, w1b_ref[...], preferred_element_type=jnp.float32)   # [N, FGp]
    e_pre = (jnp.dot(dst_oh, pa.astype(jnp.bfloat16),
                     preferred_element_type=jnp.float32)
             + jnp.dot(src_oh, pb.astype(jnp.bfloat16),
                       preferred_element_type=jnp.float32))              # [E, FGp]
    h1 = _leaky(e_pre).astype(jnp.bfloat16)

    # Fused second layer: cols [:D] = message (pre-scaled by 1/H),
    # col Dp-1 = gate.  One wide MXU pass instead of message + width-1 gate.
    gm = jnp.dot(h1, w2_ref[...], preferred_element_type=jnp.float32)    # [E, Dp]
    gate = gm[:, Dp - 1:]                                                # [E, 1]

    # Global max is enough for softmax stability (shift-invariant per segment).
    g_max = jnp.max(gate, axis=None, keepdims=True)                      # [1, 1]
    a = jnp.exp(pow_ref[head] * logw_ref[...] + gate - g_max)            # [E, 1]

    # Fuse seg_sum into the pooled scatter: put `a` itself in the last lane.
    col = lax.broadcasted_iota(jnp.int32, gm.shape, 1)
    wmsg = (a * jnp.where(col == Dp - 1, 1.0, gm)).astype(_MSG_DTYPE)    # [E, Dp]

    pooled = jnp.dot(dst_oh_t, wmsg, preferred_element_type=jnp.float32)  # [N, Dp]
    inv = pl.reciprocal(pooled[:, Dp - 1:] + 1e-10, approx=True)           # [N, 1]

    @pl.when(head == 0)
    def _():
        o_ref[...] = h                    # residual term

    # 1/H is folded into the packed message weights -> this sums to head-mean.
    o_ref[...] += pooled * inv


def _comp_pool_kernel(h_ref, batr_ref, logw_ref, w1_ref, w2_ref, pow_ref, o_ref):
    head = pl.program_id(0)

    hb = h_ref[...].astype(jnp.bfloat16)                                  # [N, Dp]
    N, Dp = h_ref.shape
    G = o_ref.shape[0]

    h1 = _leaky(jnp.dot(hb, w1_ref[...],
                        preferred_element_type=jnp.float32)).astype(jnp.bfloat16)
    gm = jnp.dot(h1, w2_ref[...], preferred_element_type=jnp.float32)    # [N, Dp]
    gate = gm[:, Dp - 1:]                                                # [N, 1]

    g_max = jnp.max(gate, axis=None, keepdims=True)
    a = jnp.exp(pow_ref[head] * logw_ref[...] + gate - g_max)            # [N, 1]

    col = lax.broadcasted_iota(jnp.int32, gm.shape, 1)
    wmsg = (a * jnp.where(col == Dp - 1, 1.0, gm)).astype(_MSG_DTYPE)    # [N, Dp]

    # Transposed-orientation crystal one-hot built in-kernel -> plain MXU scatter.
    row_g = lax.broadcasted_iota(jnp.int32, (G, N), 0)
    bat_oh_t = jnp.where(row_g == batr_ref[...], 1.0, 0.0).astype(_MSG_DTYPE)

    pooled = jnp.dot(bat_oh_t, wmsg, preferred_element_type=jnp.float32)  # [G, Dp]
    inv = pl.reciprocal(pooled[:, Dp - 1:] + 1e-10, approx=True)

    @pl.when(head == 0)
    def _():
        o_ref[...] = jnp.zeros_like(o_ref)

    o_ref[...] += pooled * inv


# ----------------------------------------------------------------------------
# pallas_call wrappers
# ----------------------------------------------------------------------------
_VMEM_LIMIT = 64 * 1024 * 1024  # raise scoped VMEM above the 16/32 MiB defaults


def pallas_project(x, w_pad, pos_col, pos_idx):
    N = x.shape[0]
    D_p = w_pad.shape[1]
    return pl.pallas_call(
        functools.partial(_project_kernel, pos_idx=pos_idx),
        out_shape=jax.ShapeDtypeStruct((N, D_p), jnp.float32),
        in_specs=[pl.BlockSpec(memory_space=pltpu.MemorySpace.VMEM)] * 3,
        out_specs=pl.BlockSpec(memory_space=pltpu.MemorySpace.VMEM),
    )(x, w_pad, pos_col)


def _head_spec(shape):
    # per-head weight slice: leading head dim squeezed, trailing dims full
    return pl.BlockSpec((pl.Squeezed(),) + tuple(shape), lambda hh: (hh, 0, 0))


def pallas_gat_layer(h, dst_col, dst_row, src_col, log_w_e, stacked):
    w1a, w1b, w2, pw = stacked
    H, D_p, FG_p = w1a.shape
    N = h.shape[0]
    E = dst_col.shape[0]
    return pl.pallas_call(
        _gat_layer_kernel,
        out_shape=jax.ShapeDtypeStruct((N, D_p), jnp.float32),
        grid=(H,),
        in_specs=[
            pl.BlockSpec((N, D_p), lambda hh: (0, 0)),        # h (DMA'd once)
            pl.BlockSpec((E, 1), lambda hh: (0, 0)),          # dst idx [E,1]
            pl.BlockSpec((1, E), lambda hh: (0, 0)),          # dst idx [1,E]
            pl.BlockSpec((E, 1), lambda hh: (0, 0)),          # src idx [E,1]
            pl.BlockSpec((E, 1), lambda hh: (0, 0)),          # log edge weights
            _head_spec((D_p, FG_p)),                          # W1 acting on h[dst]
            _head_spec((D_p, FG_p)),                          # W1 acting on h[src]
            _head_spec((FG_p, D_p)),                          # fused W2 (msg|gate)
            pl.BlockSpec(memory_space=pltpu.MemorySpace.SMEM),  # pow [H]
        ],
        out_specs=pl.BlockSpec((N, D_p), lambda hh: (0, 0)),  # resident accumulator
        compiler_params=pltpu.CompilerParams(
            dimension_semantics=("arbitrary",),
            vmem_limit_bytes=_VMEM_LIMIT),
    )(h, dst_col, dst_row, src_col, log_w_e, w1a, w1b, w2, pw)


def pallas_comp_pool(h, batch_row, log_w_n, stacked, num_graphs):
    w1, w2, pw = stacked
    H, D_p, FG_p = w1.shape
    N = h.shape[0]
    return pl.pallas_call(
        _comp_pool_kernel,
        out_shape=jax.ShapeDtypeStruct((num_graphs, D_p), jnp.float32),
        grid=(H,),
        in_specs=[
            pl.BlockSpec((N, D_p), lambda hh: (0, 0)),
            pl.BlockSpec((1, N), lambda hh: (0, 0)),          # batch idx [1,N]
            pl.BlockSpec((N, 1), lambda hh: (0, 0)),          # log node weights
            _head_spec((D_p, FG_p)),
            _head_spec((FG_p, D_p)),
            pl.BlockSpec(memory_space=pltpu.MemorySpace.SMEM),
        ],
        out_specs=pl.BlockSpec((num_graphs, D_p), lambda hh: (0, 0)),
        compiler_params=pltpu.CompilerParams(
            dimension_semantics=("arbitrary",),
            vmem_limit_bytes=_VMEM_LIMIT),
    )(h, batch_row, log_w_n, w1, w2, pw)


# ----------------------------------------------------------------------------
# Parameter init (deterministic, xavier-uniform with leaky_relu gain) + packing
# ----------------------------------------------------------------------------
def _xavier(key, shape):
    gain = jnp.sqrt(2.0 / (1.0 + NEG_SLOPE ** 2))
    bound = gain * jnp.sqrt(6.0 / (shape[0] + shape[1]))
    return jax.random.uniform(key, shape, jnp.float32, -bound, bound)


def _init_head(key, din, dout, f_dim, g_dim):
    k1, k2, k3, k4 = jax.random.split(key, 4)
    return {
        "wg1": _xavier(k1, (din, f_dim)),
        "wg2": _xavier(k2, (f_dim, 1)),
        "wm1": _xavier(k3, (din, g_dim)),
        "wm2": _xavier(k4, (g_dim, dout)),
        "pow": jnp.ones((1,), jnp.float32),   # learnable pow, init 1.0
    }


def init_descriptor_network(key, input_dim, n_graphs, elem_heads,
                            internal_elem_dim, g_elem_dim, f_elem_dim,
                            comp_heads, g_comp_dim, f_comp_dim):
    D = internal_elem_dim
    keys = jax.random.split(key, 1 + n_graphs * elem_heads + comp_heads)
    it = iter(keys)
    params = {"project": _xavier(next(it), (input_dim, D - 1))}
    params["graphs"] = [
        [_init_head(next(it), 2 * D, D, f_elem_dim, g_elem_dim)
         for _ in range(elem_heads)]
        for _ in range(n_graphs)
    ]
    params["comp_pool"] = [
        _init_head(next(it), D, D, f_comp_dim, g_comp_dim)
        for _ in range(comp_heads)
    ]
    return params


def _pad2d(a, rows, cols):
    return jnp.zeros((rows, cols), a.dtype).at[:a.shape[0], :a.shape[1]].set(a)


def _pack_second_layer(wg2, wm2, D, D_p, FG_p, inv_heads):
    """Fused W2 [FG_p, D_p]: message block in cols [:D] (scaled by 1/H),
    gate column in the last lane; matches the fused (gate||message) hidden."""
    f = wg2.shape[0]
    g = wm2.shape[0]
    w2 = jnp.zeros((FG_p, D_p), jnp.float32)
    w2 = w2.at[:f, D_p - 1].set(wg2[:, 0])
    w2 = w2.at[f:f + g, :D].set(wm2 * inv_heads)
    return w2


def _pack_gat_head(hp, D, D_p, FG_p, inv_heads):
    w1 = jnp.concatenate([hp["wg1"], hp["wm1"]], axis=1)    # [2D, f+g]
    w1a = _pad2d(w1[:D], D_p, FG_p)                          # acts on h[dst]
    w1b = _pad2d(w1[D:], D_p, FG_p)                          # acts on h[src]
    w2 = _pack_second_layer(hp["wg2"], hp["wm2"], D, D_p, FG_p, inv_heads)
    return w1a, w1b, w2


def _pack_comp_head(hp, D, D_p, FG_p, inv_heads):
    w1 = _pad2d(jnp.concatenate([hp["wg1"], hp["wm1"]], axis=1), D_p, FG_p)
    w2 = _pack_second_layer(hp["wg2"], hp["wm2"], D, D_p, FG_p, inv_heads)
    return w1, w2


def prepare_descriptor_params(params, internal_elem_dim):
    """Pack per-head weights into stacked [H, ...] bf16 MXU operands with
    feature dims padded to multiples of 128 and 1/H folded in."""
    D = internal_elem_dim
    D_p = _round_up(D, 128)
    prepared = {"dim": D, "dim_pad": D_p}

    wp = params["project"]                                   # [input_dim, D-1]
    prepared["project"] = _pad2d(wp, wp.shape[0], D_p)

    graphs = []
    for layer_heads in params["graphs"]:
        H = len(layer_heads)
        FG = layer_heads[0]["wg1"].shape[1] + layer_heads[0]["wm1"].shape[1]
        FG_p = _round_up(FG, 128)
        w1a, w1b, w2, pw = [], [], [], []
        for hp in layer_heads:
            a, b, c = _pack_gat_head(hp, D, D_p, FG_p, 1.0 / H)
            w1a.append(a); w1b.append(b); w2.append(c)
            pw.append(hp["pow"].reshape(1))
        graphs.append((jnp.stack(w1a).astype(jnp.bfloat16),   # [H, Dp, FGp]
                       jnp.stack(w1b).astype(jnp.bfloat16),   # [H, Dp, FGp]
                       jnp.stack(w2).astype(jnp.bfloat16),    # [H, FGp, Dp]
                       jnp.concatenate(pw).astype(jnp.float32)))
    prepared["graphs"] = graphs

    heads = params["comp_pool"]
    H = len(heads)
    FG = heads[0]["wg1"].shape[1] + heads[0]["wm1"].shape[1]
    FG_p = _round_up(FG, 128)
    w1s, w2s, pw = [], [], []
    for hp in heads:
        a, b = _pack_comp_head(hp, D, D_p, FG_p, 1.0 / H)
        w1s.append(a); w2s.append(b)
        pw.append(hp["pow"].reshape(1))
    prepared["comp"] = (jnp.stack(w1s).astype(jnp.bfloat16),
                        jnp.stack(w2s).astype(jnp.bfloat16),
                        jnp.concatenate(pw).astype(jnp.float32))
    return prepared


# ----------------------------------------------------------------------------
# Forward pass
# ----------------------------------------------------------------------------
def descriptor_network_forward(prepared, x, edge_index, pos, batch_index,
                               num_graphs):
    D = prepared["dim"]
    pos_f = pos.astype(jnp.float32)

    # project_fea + fractional-weight column, fused in one kernel (padded to Dp)
    h = pallas_project(x.astype(jnp.float32), prepared["project"],
                       pos_f[:, None], D - 1)                           # [N, Dp]

    src = edge_index[0].astype(jnp.int32)   # neighbor / source node of each edge
    dst = edge_index[1].astype(jnp.int32)   # self / destination (messages pooled here)
    dst_col = dst[:, None]                                              # [E, 1]
    dst_row = dst[None, :]                                              # [1, E]
    src_col = src[:, None]                                              # [E, 1]
    batch_row = batch_index.astype(jnp.int32)[None, :]                  # [1, N]

    # hoisted, clamped log-weights (handles pos == 0 edge case of torch.pow)
    log_w_e = jnp.log(jnp.maximum(pos_f[src], 1e-30))[:, None]          # [E, 1]
    log_w_n = jnp.log(jnp.maximum(pos_f, 1e-30))[:, None]               # [N, 1]

    # GATRoostLayer stack: one fused pallas_call per layer (grid over heads)
    for stacked in prepared["graphs"]:
        h = pallas_gat_layer(h, dst_col, dst_row, src_col, log_w_e, stacked)

    # composition-level weighted attention pooling (grid over heads)
    out = pallas_comp_pool(h, batch_row, log_w_n, prepared["comp"], num_graphs)
    return out[:, :D]                                                   # [G, D]


# ----------------------------------------------------------------------------
# Demo
# ----------------------------------------------------------------------------
if __name__ == "__main__":
    input_dim = 16
    internal_elem_dim = 32
    n_graphs = 2
    elem_heads = 2
    g_elem_dim = 32
    f_elem_dim = 32
    comp_heads = 2
    g_comp_dim = 32
    f_comp_dim = 32

    num_graphs = 2
    nodes_per_graph = 4
    N = num_graphs * nodes_per_graph

    key = jax.random.PRNGKey(0)
    k_par, k_x, k_pos = jax.random.split(key, 3)

    raw_params = init_descriptor_network(
        k_par, input_dim, n_graphs, elem_heads, internal_elem_dim,
        g_elem_dim, f_elem_dim, comp_heads, g_comp_dim, f_comp_dim)
    params = prepare_descriptor_params(raw_params, internal_elem_dim)

    # node (element) embedding features
    x = jax.random.normal(k_x, (N, input_dim), jnp.float32)

    # fractional composition weights, normalized per graph (positive)
    raw = jax.random.uniform(k_pos, (N,), jnp.float32, 0.1, 1.0)
    batch_index = jnp.repeat(jnp.arange(num_graphs, dtype=jnp.int32),
                             nodes_per_graph)
    seg_tot = jax.ops.segment_sum(raw, batch_index, num_segments=num_graphs)
    pos = raw / seg_tot[batch_index]

    # fully-connected edges (incl. self loops) within each graph:
    # edge_index[0] = src (neighbor), edge_index[1] = dst (self)
    srcs, dsts = [], []
    for g in range(num_graphs):
        base = g * nodes_per_graph
        for i in range(nodes_per_graph):
            for j in range(nodes_per_graph):
                srcs.append(base + j)
                dsts.append(base + i)
    edge_index = jnp.array([srcs, dsts], dtype=jnp.int32)   # [2, E], E = 32

    out = descriptor_network_forward(params, x, edge_index, pos, batch_index,
                                     num_graphs)
    out = jax.block_until_ready(out)

    assert out.shape == (num_graphs, internal_elem_dim)
    assert bool(jnp.all(jnp.isfinite(out)))
    print("KERNEL_OK")
</pallas_src>

<mosaic_0001>
module attributes {stable_mosaic.version = 11 : i64} {
  func.func @_project_kernel(%arg0: memref<8x16xf32, #tpu.memory_space<vmem>>, %arg1: memref<16x128xf32, #tpu.memory_space<vmem>>, %arg2: memref<8x1xf32, #tpu.memory_space<vmem>>, %arg3: memref<8x128xf32, #tpu.memory_space<vmem>>) attributes {dimension_semantics = [], scalar_prefetch = 0 : i64, scratch_operands = 0 : i64, tpu.core_type = #tpu.core_type<tc>} {
    %c0 = arith.constant 0 : index
    %c0_0 = arith.constant 0 : index
    %0 = vector.load %arg0[%c0, %c0_0] : memref<8x16xf32, #tpu.memory_space<vmem>>, vector<8x16xf32>
    %c0_1 = arith.constant 0 : index
    %c0_2 = arith.constant 0 : index
    %1 = vector.load %arg1[%c0_1, %c0_2] : memref<16x128xf32, #tpu.memory_space<vmem>>, vector<16x128xf32>
    %cst = arith.constant dense<0.000000e+00> : vector<8x128xf32>
    %2 = tpu.matmul %0, %1, %cst {dimension_numbers = #tpu.dot_dimension_numbers<[1], [0], [0], [1], [0, 0, 1, 1], [], []>} : vector<8x16xf32>, vector<16x128xf32>, vector<8x128xf32> -> vector<8x128xf32>
    %3 = tpu.iota {dimensions = array<i32: 1>} : vector<8x128xi32>
    %c31_i32 = arith.constant 31 : i32
    %4 = vector.broadcast %c31_i32 : i32 to vector<8x128xi32>
    %5 = arith.cmpi eq, %3, %4 : vector<8x128xi32>
    %c0_3 = arith.constant 0 : index
    %c0_4 = arith.constant 0 : index
    %6 = vector.load %arg2[%c0_3, %c0_4] : memref<8x1xf32, #tpu.memory_space<vmem>>, vector<8x1xf32>
    %7 = vector.shape_cast %6 : vector<8x1xf32> to vector<8x1xf32>
    %8 = vector.broadcast %7 : vector<8x1xf32> to vector<8x128xf32>
    %9 = arith.select %5, %8, %2 : vector<8x128xi1>, vector<8x128xf32>
    %c0_5 = arith.constant 0 : index
    %c0_6 = arith.constant 0 : index
    %10 = vector.load %arg3[%c0_5, %c0_6] : memref<8x128xf32, #tpu.memory_space<vmem>>, vector<8x128xf32>
    tpu.vector_store %arg3[%c0_5, %c0_6], %9 {strides = array<i32>} : memref<8x128xf32, #tpu.memory_space<vmem>>, vector<8x128xf32>,
    return
  }
}

</mosaic_0001>

<llo_original>
// kernel: tpu_custom_call.1
$region0: #{tpu_custom_call.1}
  #allocation0 [shape = 'u32[]', space=smem, size = 0x4, offset = 0x4, fixed_abs, tag = 'smem constant byte address 0x4 - core index']
  #allocation1 [shape = 'u32[144,128]{1,0:T(1,128)}', space=vmem, size = 0x12000, scoped, tag = 'internal scratch']
  %s0 = inlined_call_operand.vmem [shape: f32[8,16], index: 0, kind: input, shape index: {}]
  %s1 = inlined_call_operand.hbm [shape: f32[16,128], index: 1, kind: input, shape index: {}]
  %s2 = inlined_call_operand.vmem [shape: f32[8,1], index: 2, kind: input, shape index: {}]
  %s3 = inlined_call_operand.hbm [shape: f32[8,128], index: 3, kind: output, shape index: {}]
  %s4 = sld [smem:[#allocation0]]
  $region26: #{tpu_custom_call.1} parent=0
    _
  %s6 = ssub.s32 1, %s4
  %s7 = scalar_select 0, %s6, %s4
  $region1: #{tpu_custom_call.1} parent=0
    #allocation2 [shape = 'u8[8192]{0}', space=vmem, size = 0x2000, scoped, tag = 'input window, operand 1, single buffered']
    #allocation3 [shape = 's32[1]{0}', space=sflag, size = 0x4, scoped, tag = 'scoped memory for tpu_custom_call.1']
    #allocation4 [shape = 's32[1]{0}', space=sflag, size = 0x4, scoped, tag = 'scoped memory for tpu_custom_call.1']
    #allocation5 [shape = 'u8[4096]{0}', space=vmem, size = 0x1000, scoped, tag = 'output window, operand 0, single buffered']
    %8 = vsyncpa [#allocation3], 0
    %9 = vsyncpa [#allocation4], 0
    // Predicated region
    $region2: #{tpu_custom_call.1} parent=1 // pred_check
      _
    $region3: #{tpu_custom_call.1} parent=1 // pred_check_branch
      %11 = sbr.rel (0) target = $region5
    $region4: #{tpu_custom_call.1} parent=1 // pred_region
      _
    $region5: #{tpu_custom_call.1} parent=1 // pred_fallthru
      _
    // Predicated region
    $region6: #{tpu_custom_call.1} parent=1 // pred_check
      _
    $region7: #{tpu_custom_call.1} parent=1 // pred_check_branch
      %13 = sbr.rel (0) target = $region9
    $region8: #{tpu_custom_call.1} parent=1 // pred_region
      %s15 = ssub.s32 256, 256
      %16 = vsyncadd [#allocation3], %s15
      %s17 = sshll.u32 [#allocation2], 4
      %s18 = int_to_ptr.vmem [resolvable:$true] %s17
      %23 = dma.hbm_to_vmem [thread:$0]  %s1, 256, %s18, [#allocation3], 128, 128, 8
    $region9: #{tpu_custom_call.1} parent=1 // pred_fallthru
      _
    // Predicated region
    $region10: #{tpu_custom_call.1} parent=1 // pred_check
      _
    $region11: #{tpu_custom_call.1} parent=1 // pred_check_branch
      %25 = sbr.rel (0) target = $region13
    $region12: #{tpu_custom_call.1} parent=1 // pred_region
      _
    $region13: #{tpu_custom_call.1} parent=1 // pred_fallthru
      _
    // Predicated region
    $region14: #{tpu_custom_call.1} parent=1 // pred_check
      _
    $region15: #{tpu_custom_call.1} parent=1 // pred_check_branch
      %27 = sbr.rel (0) target = $region17
    $region16: #{tpu_custom_call.1} parent=1 // pred_region
      %28 = dma.done [#allocation3], 256
    $region17: #{tpu_custom_call.1} parent=1 // pred_fallthru
      _
    %v29 = vld [vmem:[%s0] sm:$0xff]
    %v30 = vld [vmem:[#allocation2] sm:$0xff]
    %v31 = vld [vmem:[#allocation2 + $0x8] sm:$0xff]
    %vm32 = vcmask 130048
    %v34 = vsel %vm32, %v29, 0
    %36 = vmatprep.subr.mxu0 0.0
    %37 = vmatpush1.msra.mxu0 %v30
    %38 = vmatprep.subr.mxu0 0.0
    %39 = vmatpush1.msra.mxu0 %v31
    %40 = vmatprep.subr.mxu0 0.0
    %41 = vmatpush1.msra.mxu0 0.0
    %42 = vmatprep.subr.mxu0 0.0
    %43 = vmatpush1.msra.mxu0 0.0
    %44 = vmatprep.subr.mxu0 0.0
    %45 = vmatpush1.msra.mxu0 0.0
    %46 = vmatprep.subr.mxu0 0.0
    %47 = vmatpush1.msra.mxu0 0.0
    %48 = vmatprep.subr.mxu0 0.0
    %49 = vmatpush1.msra.mxu0 0.0
    %50 = vmatprep.subr.mxu0 0.0
    %51 = vmatpush1.msra.mxu0 0.0
    %52 = vmatprep.subr.mxu0 0.0
    %53 = vmatpush1.msra.mxu0 0.0
    %54 = vmatprep.subr.mxu0 0.0
    %55 = vmatpush1.msra.mxu0 0.0
    %56 = vmatprep.subr.mxu0 0.0
    %57 = vmatpush1.msra.mxu0 0.0
    %58 = vmatprep.subr.mxu0 0.0
    %59 = vmatpush1.msra.mxu0 0.0
    %60 = vmatprep.subr.mxu0 0.0
    %61 = vmatpush1.msra.mxu0 0.0
    %62 = vmatprep.subr.mxu0 0.0
    %63 = vmatpush1.msra.mxu0 0.0
    %64 = vmatprep.subr.mxu0 0.0
    %65 = vmatpush1.msra.mxu0 0.0
    %66 = vmatprep.subr.mxu0 0.0
    %67 = vmatpush1.msra.mxu0 0.0
    %68 = vmatprep.subr.mxu0 0.0
    %69 = vmatpush1.msra.mxu0 0.0
    %70 = vmatprep.subr.mxu0 0.0
    %71 = vmatpush1.msra.mxu0 0.0
    %72 = vmatprep.subr.mxu0 0.0
    %73 = vmatpush1.msra.mxu0 0.0
    %74 = vmatprep.subr.mxu0 0.0
    %75 = vmatpush1.msra.mxu0 0.0
    %76 = vmatprep.subr.mxu0 0.0
    %77 = vmatpush1.msra.mxu0 0.0
    %78 = vmatprep.subr.mxu0 0.0
    %79 = vmatpush1.msra.mxu0 0.0
    %80 = vmatprep.subr.mxu0 0.0
    %81 = vmatpush1.msra.mxu0 0.0
    %82 = vmatprep.subr.mxu0 0.0
    %83 = vmatpush1.msra.mxu0 0.0
    %84 = vmatprep.subr.mxu0 0.0
    %85 = vmatpush1.msra.mxu0 0.0
    %86 = vmatprep.subr.mxu0 0.0
    %87 = vmatpush1.msra.mxu0 0.0
    %88 = vmatprep.subr.mxu0 0.0
    %89 = vmatpush1.msra.mxu0 0.0
    %90 = vmatprep.subr.mxu0 0.0
    %91 = vmatpush1.msra.mxu0 0.0
    %92 = vmatprep.subr.mxu0 0.0
    %93 = vmatpush1.msra.mxu0 0.0
    %94 = vmatprep.subr.mxu0 0.0
    %95 = vmatpush1.msra.mxu0 0.0
    %96 = vmatprep.subr.mxu0 0.0
    %97 = vmatpush1.msra.mxu0 0.0
    %98 = vmatprep.subr.mxu0 0.0
    %99 = vmatpush1.msra.mxu0 0.0
    %100 = vmatprep.mubr.f32.mxu0 0.0
    %101 = vmatmul.mubr.f32.gmra.mrb[0].mxu0 %v34
    %v102 = vpop.f32.mrb[0].mxu0
    %v103 = vadd.f32 0.0, %v102
    %v104 = vpop.f32.mrb[0].mxu0
    %105 = vdwg.mxu0
    %v106 = vlaneseq
    %v107 = vand.u32 %v106, 127
    %vm108 = vcmp.eq.s32.totalorder %v107, 31
    %v109 = vld [vmem:[%s2] sm:$0xff]
    %111 = vset.pattern.permute.xlu0 0
    %112 = vperm.xlu0 %111, %v109
    %v113 = vpop.permute.xlu0 %112
    %v115 = vsel %vm108, %v113, %v103
    %116 = vst [vmem:[#allocation5] sm:$0xff] %v115
    // Predicated region
    $region18: #{tpu_custom_call.1} parent=1 // pred_check
      _
    $region19: #{tpu_custom_call.1} parent=1 // pred_check_branch
      %118 = sbr.rel (0) target = $region21
    $region20: #{tpu_custom_call.1} parent=1 // pred_region
      %s120 = ssub.s32 128, 128
      %121 = vsyncadd [#allocation4], %s120
      %s123 = sshll.u32 [#allocation5], 4
      %s124 = int_to_ptr.vmem [resolvable:$true] %s123
      %126 = dma.vmem_to_hbm [thread:$0]  %s124, 128, %s3, [#allocation4]
    $region21: #{tpu_custom_call.1} parent=1 // pred_fallthru
      _
    // Predicated region
    $region22: #{tpu_custom_call.1} parent=1 // pred_check
      _
    $region23: #{tpu_custom_call.1} parent=1 // pred_check_branch
      %128 = sbr.rel (0) target = $region25
    $region24: #{tpu_custom_call.1} parent=1 // pred_region
      %129 = dma.done [#allocation4], 128
    $region25: #{tpu_custom_call.1} parent=1 // pred_fallthru
      _
    %130 = vsyncpa [#allocation3], 1
    %131 = vsyncpa [#allocation4], 1

</llo_original>
